<compile_context>
chip_gen: v7x
topology: tpu7x:2x2x1
jax: 0.10.0
libtpu: 0.0.40
codegen_flags: <defaults>
</compile_context>

<pallas_src>
import math

import jax
import jax.numpy as jnp
from jax.experimental import pallas as pl
from jax.experimental.pallas import tpu as pltpu

_B_CONST = 1.0 / 128.0
_INV_GAMMA = 1.0 / 2.2
_EPS = 1e-8


def _hdr_seq_kernel(ek_ref, gt_ref, out_ref, gt_seq_ref, out_seq_ref, q_ref):
    """Grid point (m, k): tone-map one (TM, LANE) tile at exposure ek[k]."""
    k = pl.program_id(1)
    ek = ek_ref[k]                        # scalar read from SMEM
    scale = 1.0 / (ek + _EPS)             # scalar unit
    inv_den = 1.0 / (1.0 - _B_CONST)      # python constant

    gt = gt_ref[...]                      # (TM, LANE) f32, resident across k
    out = out_ref[...]                    # (TM, LANE) f32, resident across k

    gt1 = jnp.clip((gt * scale - _B_CONST) * inv_den, _EPS, 1.0)
    out1 = jnp.clip((out * scale - _B_CONST) * inv_den, _EPS, 1.0)

    gt_p = gt1 ** _INV_GAMMA              # gamma 1/2.2 -> EUP exp/log path
    out_p = out1 ** _INV_GAMMA

    gt_seq_ref[0] = gt_p
    out_seq_ref[0] = out_p

    # Per-tile L1 partial sum (XLU reduce; free slot while writes dominate).
    part = jnp.sum(jnp.abs(gt_p - out_p))
    q_ref[...] = jnp.broadcast_to(part, q_ref.shape).astype(jnp.float32)


def _choose_lane(n_elems, max_lane=4096):
    """Largest multiple of 128 (<= max_lane) that evenly divides n_elems."""
    best = None
    lane = 128
    while lane <= max_lane and lane <= n_elems:
        if n_elems % lane == 0:
            best = lane
        lane += 128
    return best


def _choose_tm(m, lane, target_bytes=2 << 20):
    """Sublane tile rows: ~2 MiB per tile, multiple of 8 dividing M (or M)."""
    rows = max(8, target_bytes // (lane * 4))
    if m <= rows:
        return m
    rows -= rows % 8
    for tm in range(rows, 0, -8):
        if m % tm == 0:
            return tm
    return m  # no multiple-of-8 divisor -> single full-height tile (correct)


def _exposure_values(gt):
    """Exposure list ek (host floats), mirroring LDR_Seq.generation."""
    _, C, _, _ = gt.shape
    if C == 3:
        lum = gt[:, 2] * 0.212656 + gt[:, 1] * 0.715158 + gt[:, 0] * 0.072186
    elif C == 1:
        lum = gt[:, 0]
    else:
        raise ValueError("get_luminance: wrong matrix dimension")
    img_l = jnp.log2(lum)
    # TODO(synk): the exposure count is data-dependent in PyTorch (python loop
    # over a runtime tensor) and fixes the OUTPUT SHAPES, so it must be
    # resolved on host (blocking sync + recompile per distinct log2 range).
    l_min = float(jnp.min(img_l))
    l_max = float(jnp.max(img_l))
    f8_stops = math.ceil((l_max - l_min) / 8.0)
    l_start = l_min + (l_max - l_min - f8_stops * 8.0) / 2.0
    number = int(3 * f8_stops)
    return [2.0 ** (l_start + (i * 8 + 3) / 3.0) for i in range(number)]


def hdr_metric(output, gt):
    """JAX/Pallas equivalent of hdrMetric.forward(output, gt)."""
    assert output.shape == gt.shape
    B, C, H, W = gt.shape

    gt = gt.astype(jnp.float32)
    output = output.astype(jnp.float32)

    ek_list = _exposure_values(gt)
    number = len(ek_list)
    if number == 0:
        empty = jnp.zeros((0, B, C, H, W), jnp.float32)
        return jnp.zeros((0,), jnp.float32), empty, empty
    ek = jnp.asarray(ek_list, dtype=jnp.float32)

    # --- lane-dense flat layout.
    N = B * C * H * W
    lane = _choose_lane(N)
    if lane is None:
        lane = W                      # fallback (possibly masked stores)
        M = B * C * H
    else:
        M = N // lane
    TM = _choose_tm(M, lane)
    GM = M // TM

    gt2 = gt.reshape(M, lane)
    out2 = output.reshape(M, lane)

    tile_bytes = TM * lane * 4
    # inputs (2 arrays x 2 bufs) + seq outputs (2 arrays x 2 bufs) ~= 8 tiles.
    vmem_limit = min(max(10 * tile_bytes + (4 << 20), 32 << 20), 100 << 20)

    grid_spec = pltpu.PrefetchScalarGridSpec(
        num_scalar_prefetch=0,
        grid=(GM, number),  # m outer (parallel), k inner (inputs resident)
        in_specs=[
            pl.BlockSpec(memory_space=pltpu.SMEM),            # ek (K,)
            pl.BlockSpec((TM, lane), lambda m, k: (m, 0)),    # gt tile
            pl.BlockSpec((TM, lane), lambda m, k: (m, 0)),    # out tile
        ],
        out_specs=(
            pl.BlockSpec((1, TM, lane), lambda m, k: (k, m, 0)),      # gt_seq
            pl.BlockSpec((1, TM, lane), lambda m, k: (k, m, 0)),      # out_seq
            pl.BlockSpec((1, 1, 8, 128), lambda m, k: (m, k, 0, 0)),  # Q partials
        ),
    )

    gt_seq, out_seq, q_part = pl.pallas_call(
        _hdr_seq_kernel,
        out_shape=(
            jax.ShapeDtypeStruct((number, M, lane), jnp.float32),
            jax.ShapeDtypeStruct((number, M, lane), jnp.float32),
            jax.ShapeDtypeStruct((GM, number, 8, 128), jnp.float32),
        ),
        grid_spec=grid_spec,
        compiler_params=pltpu.CompilerParams(
            dimension_semantics=("parallel", "arbitrary"),
            vmem_limit_bytes=vmem_limit),
    )(ek, gt2, out2)

    q = q_part[:, :, 0, 0].sum(axis=0) / float(N)   # global L1 mean per exposure
    gt_seq = gt_seq.reshape(number, B, C, H, W)
    out_seq = out_seq.reshape(number, B, C, H, W)
    return q, gt_seq, out_seq


def _hdr_metric_ref(output, gt, ek_list):
    """Pure-JAX reference mirroring the PyTorch module (for a quiet check)."""
    b = 1.0 / 128.0
    gt_seq, out_seq, qs = [], [], []
    for e in ek_list:
        g1 = jnp.clip((gt / (e + 1e-8) - b) / (1.0 - b), 1e-8, 1.0) ** (1.0 / 2.2)
        o1 = jnp.clip((output / (e + 1e-8) - b) / (1.0 - b), 1e-8, 1.0) ** (1.0 / 2.2)
        gt_seq.append(g1)
        out_seq.append(o1)
        qs.append(jnp.mean(jnp.abs(g1 - o1)))
    return jnp.stack(qs), jnp.stack(gt_seq), jnp.stack(out_seq)


if __name__ == "__main__":
    key = jax.random.PRNGKey(0)
    k1, k2 = jax.random.split(key)
    B, C, H, W = 2, 3, 16, 16

    # HDR-like strictly-positive radiance spanning several log2 stops,
    # so the exposure sequence has a few entries (K = 3 * ceil(range/8)).
    gt = 2.0 ** jax.random.uniform(k1, (B, C, H, W), jnp.float32, -4.0, 8.0)
    noise = 1.0 + 0.05 * jax.random.normal(k2, (B, C, H, W), jnp.float32)
    output = gt * jnp.abs(noise)

    q, gt_seq, out_seq = hdr_metric(output, gt)
    jax.block_until_ready((q, gt_seq, out_seq))

    # Quiet correctness check against a pure-JAX reference.
    ek_list = _exposure_values(gt.astype(jnp.float32))
    q_ref, gt_ref, out_ref = _hdr_metric_ref(
        output.astype(jnp.float32), gt.astype(jnp.float32), ek_list)
    assert bool(jnp.allclose(q, q_ref, rtol=1e-3, atol=1e-5))
    assert bool(jnp.allclose(gt_seq, gt_ref, rtol=1e-3, atol=1e-5))
    assert bool(jnp.allclose(out_seq, out_ref, rtol=1e-3, atol=1e-5))

    print("KERNEL_OK")
</pallas_src>

<mosaic_0001>
module attributes {stable_mosaic.version = 11 : i64} {
  func.func @_hdr_seq_kernel(%arg0: i32, %arg1: i32, %arg2: memref<6xf32, #tpu.memory_space<smem>>, %arg3: memref<1x1536xf32, #tpu.memory_space<vmem>>, %arg4: memref<1x1536xf32, #tpu.memory_space<vmem>>, %arg5: memref<1x1x1536xf32, #tpu.memory_space<vmem>>, %arg6: memref<1x1x1536xf32, #tpu.memory_space<vmem>>, %arg7: memref<1x1x8x128xf32, #tpu.memory_space<vmem>>) attributes {dimension_semantics = [#tpu.dimension_semantics<parallel>, #tpu.dimension_semantics<arbitrary>], iteration_bounds = array<i64: 1, 6>, scalar_prefetch = 0 : i64, scratch_operands = 0 : i64, tpu.core_type = #tpu.core_type<tc>, window_params = [{transform_indices = @transform_0, window_bounds = array<i64: 6>}, {transform_indices = @transform_1, window_bounds = array<i64: 1, 1536>}, {transform_indices = @transform_2, window_bounds = array<i64: 1, 1536>}, {transform_indices = @transform_3, window_bounds = array<i64: 1, 1, 1536>}, {transform_indices = @transform_4, window_bounds = array<i64: 1, 1, 1536>}, {transform_indices = @transform_5, window_bounds = array<i64: 1, 1, 8, 128>}]} {
    %0 = arith.index_cast %arg1 : i32 to index
    %1 = memref.load %arg2[%0] : memref<6xf32, #tpu.memory_space<smem>>
    %cst = arith.constant 9.99999993E-9 : f32
    %2 = arith.addf %1, %cst : f32
    %cst_0 = arith.constant 1.000000e+00 : f32
    %3 = arith.divf %cst_0, %2 : f32
    %c0 = arith.constant 0 : index
    %c0_1 = arith.constant 0 : index
    %4 = vector.load %arg3[%c0, %c0_1] : memref<1x1536xf32, #tpu.memory_space<vmem>>, vector<1x1536xf32>
    %c0_2 = arith.constant 0 : index
    %c0_3 = arith.constant 0 : index
    %5 = vector.load %arg4[%c0_2, %c0_3] : memref<1x1536xf32, #tpu.memory_space<vmem>>, vector<1x1536xf32>
    %6 = vector.broadcast %3 : f32 to vector<1x1536xf32>
    %7 = arith.mulf %4, %6 : vector<1x1536xf32>
    %cst_4 = arith.constant 7.812500e-03 : f32
    %8 = vector.broadcast %cst_4 : f32 to vector<1x1536xf32>
    %9 = arith.subf %7, %8 : vector<1x1536xf32>
    %cst_5 = arith.constant 1.00787401 : f32
    %10 = vector.broadcast %cst_5 : f32 to vector<1x1536xf32>
    %11 = arith.mulf %9, %10 : vector<1x1536xf32>
    %cst_6 = arith.constant 9.99999993E-9 : f32
    %cst_7 = arith.constant 1.000000e+00 : f32
    %12 = vector.broadcast %cst_6 : f32 to vector<1x1536xf32>
    %13 = arith.maximumf %12, %11 : vector<1x1536xf32>
    %14 = vector.broadcast %cst_7 : f32 to vector<1x1536xf32>
    %15 = arith.minimumf %14, %13 : vector<1x1536xf32>
    %16 = vector.broadcast %3 : f32 to vector<1x1536xf32>
    %17 = arith.mulf %5, %16 : vector<1x1536xf32>
    %cst_8 = arith.constant 7.812500e-03 : f32
    %18 = vector.broadcast %cst_8 : f32 to vector<1x1536xf32>
    %19 = arith.subf %17, %18 : vector<1x1536xf32>
    %cst_9 = arith.constant 1.00787401 : f32
    %20 = vector.broadcast %cst_9 : f32 to vector<1x1536xf32>
    %21 = arith.mulf %19, %20 : vector<1x1536xf32>
    %cst_10 = arith.constant 9.99999993E-9 : f32
    %cst_11 = arith.constant 1.000000e+00 : f32
    %22 = vector.broadcast %cst_10 : f32 to vector<1x1536xf32>
    %23 = arith.maximumf %22, %21 : vector<1x1536xf32>
    %24 = vector.broadcast %cst_11 : f32 to vector<1x1536xf32>
    %25 = arith.minimumf %24, %23 : vector<1x1536xf32>
    %cst_12 = arith.constant 0.454545468 : f32
    %26 = vector.broadcast %cst_12 : f32 to vector<1x1536xf32>
    %27 = math.powf %15, %26 : vector<1x1536xf32>
    %cst_13 = arith.constant 0.454545468 : f32
    %28 = vector.broadcast %cst_13 : f32 to vector<1x1536xf32>
    %29 = math.powf %25, %28 : vector<1x1536xf32>
    %c0_14 = arith.constant 0 : index
    %c0_15 = arith.constant 0 : index
    %c0_16 = arith.constant 0 : index
    %30 = vector.load %arg5[%c0_14, %c0_15, %c0_16] : memref<1x1x1536xf32, #tpu.memory_space<vmem>>, vector<1x1x1536xf32>
    %31 = vector.shape_cast %30 : vector<1x1x1536xf32> to vector<1x1536xf32>
    %32 = vector.shape_cast %27 : vector<1x1536xf32> to vector<1x1x1536xf32>
    tpu.vector_store %arg5[%c0_14, %c0_15, %c0_16], %32 {strides = array<i32>} : memref<1x1x1536xf32, #tpu.memory_space<vmem>>, vector<1x1x1536xf32>,
    %c0_17 = arith.constant 0 : index
    %c0_18 = arith.constant 0 : index
    %c0_19 = arith.constant 0 : index
    %33 = vector.load %arg6[%c0_17, %c0_18, %c0_19] : memref<1x1x1536xf32, #tpu.memory_space<vmem>>, vector<1x1x1536xf32>
    %34 = vector.shape_cast %33 : vector<1x1x1536xf32> to vector<1x1536xf32>
    %35 = vector.shape_cast %29 : vector<1x1536xf32> to vector<1x1x1536xf32>
    tpu.vector_store %arg6[%c0_17, %c0_18, %c0_19], %35 {strides = array<i32>} : memref<1x1x1536xf32, #tpu.memory_space<vmem>>, vector<1x1x1536xf32>,
    %36 = arith.subf %27, %29 : vector<1x1536xf32>
    %37 = math.absf %36 : vector<1x1536xf32>
    %38 = vector.shape_cast %37 : vector<1x1536xf32> to vector<1x1x1536xf32>
    %cst_20 = arith.constant dense<0.000000e+00> : vector<1xf32>
    %39 = vector.multi_reduction <add>, %38, %cst_20 [1, 2] : vector<1x1x1536xf32> to vector<1xf32>
    %40 = vector.shape_cast %39 : vector<1xf32> to vector<1x1x1xf32>
    %41 = vector.extract %40[0, 0, 0] : f32 from vector<1x1x1xf32>
    %42 = vector.broadcast %41 : f32 to vector<1x1x8x128xf32>
    %c0_21 = arith.constant 0 : index
    %c0_22 = arith.constant 0 : index
    %c0_23 = arith.constant 0 : index
    %c0_24 = arith.constant 0 : index
    %43 = vector.load %arg7[%c0_21, %c0_22, %c0_23, %c0_24] : memref<1x1x8x128xf32, #tpu.memory_space<vmem>>, vector<1x1x8x128xf32>
    tpu.vector_store %arg7[%c0_21, %c0_22, %c0_23, %c0_24], %42 {strides = array<i32>} : memref<1x1x8x128xf32, #tpu.memory_space<vmem>>, vector<1x1x8x128xf32>,
    return
  }
  func.func @transform_0(%arg0: i32, %arg1: i32) -> i32 {
    %c0_i32 = arith.constant 0 : i32
    %c0_i32_0 = arith.constant 0 : i32
    return %c0_i32 : i32
  }
  func.func @transform_1(%arg0: i32, %arg1: i32) -> (i32, i32) {
    %c0_i32 = arith.constant 0 : i32
    %c0_i32_0 = arith.constant 0 : i32
    return %arg0, %c0_i32 : i32, i32
  }
  func.func @transform_2(%arg0: i32, %arg1: i32) -> (i32, i32) {
    %c0_i32 = arith.constant 0 : i32
    %c0_i32_0 = arith.constant 0 : i32
    return %arg0, %c0_i32 : i32, i32
  }
  func.func @transform_3(%arg0: i32, %arg1: i32) -> (i32, i32, i32) {
    %c0_i32 = arith.constant 0 : i32
    %c0_i32_0 = arith.constant 0 : i32
    return %arg1, %arg0, %c0_i32 : i32, i32, i32
  }
  func.func @transform_4(%arg0: i32, %arg1: i32) -> (i32, i32, i32) {
    %c0_i32 = arith.constant 0 : i32
    %c0_i32_0 = arith.constant 0 : i32
    return %arg1, %arg0, %c0_i32 : i32, i32, i32
  }
  func.func @transform_5(%arg0: i32, %arg1: i32) -> (i32, i32, i32, i32) {
    %c0_i32 = arith.constant 0 : i32
    %c0_i32_0 = arith.constant 0 : i32
    %c0_i32_1 = arith.constant 0 : i32
    return %arg0, %arg1, %c0_i32, %c0_i32_0 : i32, i32, i32, i32
  }
}

</mosaic_0001>

<llo_original>
// kernel: tpu_custom_call.1
$region0: #{tpu_custom_call.1}
  #allocation0 [shape = 'u32[]', space=smem, size = 0x4, offset = 0x4, fixed_abs, tag = 'smem constant byte address 0x4 - core index']
  #allocation1 [shape = 'u32[144,128]{1,0:T(1,128)}', space=vmem, size = 0x12000, scoped, tag = 'internal scratch']
  %s0 = inlined_call_operand.hbm [shape: f32[6], index: 0, kind: input, shape index: {}]
  %s1 = inlined_call_operand.hbm [shape: f32[1,1536], index: 1, kind: input, shape index: {}]
  %s2 = inlined_call_operand.hbm [shape: f32[1,1536], index: 2, kind: input, shape index: {}]
  %s3 = inlined_call_operand.hbm [shape: f32[6,1,1536], index: 3, kind: output, shape index: {0}]
  %s4 = inlined_call_operand.hbm [shape: f32[6,1,1536], index: 4, kind: output, shape index: {1}]
  %s5 = inlined_call_operand.hbm [shape: f32[1,6,8,128], index: 5, kind: output, shape index: {2}]
  %6 = xla_tuple %s3, %s4, %s5
  %s7 = sld [smem:[#allocation0]]
  $region73: #{tpu_custom_call.1} parent=0
    _
  %s9 = ssub.s32 1, %s7
  %s10 = scalar_select 0, %s9, %s7
  $region1: #{tpu_custom_call.1} parent=0
    #allocation2 [shape = 'u8[512]{0}', space=smem, size = 0x200, scoped, tag = 'input window, operand 0, single buffered']
    #allocation3 [shape = 's32[2]{0}', space=sflag, size = 0x8, scoped, tag = 'scoped memory for tpu_custom_call.1']
    #allocation4 [shape = 's32[2]{0}', space=sflag, size = 0x8, scoped, tag = 'scoped memory for tpu_custom_call.1']
    #allocation5 [shape = 's32[2]{0}', space=sflag, size = 0x8, scoped, tag = 'scoped memory for tpu_custom_call.1']
    #allocation6 [shape = 'u8[6144]{0}', space=vmem, size = 0x1800, scoped, tag = 'input window, operand 1, single buffered']
    #allocation7 [shape = 'u8[6144]{0}', space=vmem, size = 0x1800, scoped, tag = 'input window, operand 2, single buffered']
    #allocation8 [shape = 's32[1]{0}', space=sflag, size = 0x4, scoped, tag = 'scoped memory for tpu_custom_call.1']
    #allocation9 [shape = 'u8[12288]{0}', space=vmem, size = 0x3000, scoped, tag = 'output window, operand 0']
    #allocation10 [shape = 'u8[12288]{0}', space=vmem, size = 0x3000, scoped, tag = 'output window, operand 1']
    #allocation11 [shape = 's32[2]{0}', space=sflag, size = 0x8, scoped, tag = 'scoped memory for tpu_custom_call.1']
    #allocation12 [shape = 'u8[8192]{0}', space=vmem, size = 0x2000, scoped, tag = 'output window, operand 2']
    %11 = vsyncpa [#allocation5], 0
    %12 = vsyncpa [#allocation3], 0
    %13 = vsyncpa [#allocation8], 0
    %14 = vsyncpa [#allocation4], 0
    %s15 = scalar_lea.sflag [#allocation4], 1
    %16 = vsyncpa %s15, 0
    %17 = vsyncpa [#allocation11], 0
    %s18 = scalar_lea.sflag [#allocation11], 1
    %19 = vsyncpa %s18, 0
    loop: start=0, step=1, limit=8
    $region2: #{tpu_custom_call.1} parent=1 // loop_pre_header
      _
    $region3: #{tpu_custom_call.1} parent=1 // loop_header
      %s21 = sphi 0, %s25
      %p22 = scmp.ge.s32.totalorder %s21, 8
      %s28 = sphi 0, %s40
      %s29 = sphi 0, %s36
      %s30 = sphi 0, %s28
      %s31 = sphi 0, %s29
      %s32 = sphi 0, %s30
      %s33 = sphi 0, %s31
      %s41 = sphi 0, %s41
      %s43 = sphi 0, %s41
      %s44 = sphi 0, %s43
      %s58 = sphi 0, %s44
      %s64 = sphi 0, %s66
      %s67 = sphi 0, %s64
      %s68 = sphi 0, %s67
      %s84 = sphi 0, %s68
      %s90 = sphi 0, %s92
      %s93 = sphi 0, %s90
      %s94 = sphi 0, %s93
      %s110 = sphi 0, %s94
      %s118 = sphi 0, %s120
      %s121 = sphi 0, %s118
      %s122 = sphi 0, %s121
      %s138 = sphi 0, %s122
      %s146 = sphi 0, %s148
      %s149 = sphi 0, %s146
      %s150 = sphi 0, %s149
      %s166 = sphi 0, %s150
      %s174 = sphi 0, %s176
      %s177 = sphi 0, %s174
      %s178 = sphi 0, %s177
      %s194 = sphi 0, %s178
    $region4: #{tpu_custom_call.1} parent=1 // loop_header_branch
      %24 = sbr.rel (%p22) target = $region8
    $region5: #{tpu_custom_call.1} parent=1 // loop_body
      %s26 = ssub.s32 %s21, 1
      %s27 = ssub.s32 %s21, 2
      %s34 = sadd.s32 1, %s29
      %p35 = scmp.ge.s32.totalorder %s34, 6
      %s36 = scalar_select %p35, 0, %s34
      %s37 = sadd.s32 1, %s28
      %s38 = scalar_select %p35, %s37, %s28
      %p39 = scmp.ge.s32.totalorder %s38, 1
      %s40 = scalar_select %p39, 0, %s38
      %s42 = sadd.s32 %s41, 1
      %p45 = scmp.eq.s32.totalorder %s21, 5
      %p46 = scmp.ne.s32.totalorder %s41, %s43
      %p47 = scmp.eq.s32.totalorder %s21, 0
      %p48 = por %p46, %p47
      %p49 = scmp.ne.s32.totalorder %s41, %s43
      %p50 = scmp.eq.s32.totalorder %s26, 5
      %p51 = por %p49, %p50
      %p52 = scmp.ne.s32.totalorder %s43, %s44
      %p53 = scmp.eq.s32.totalorder %s26, 0
      %p54 = por %p52, %p53
      %p55 = scmp.ne.s32.totalorder %s43, %s44
      %p56 = scmp.eq.s32.totalorder %s27, 5
      %p57 = por %p55, %p56
      %p59 = scmp.ne.s32.totalorder %s44, %s58
      %p60 = scmp.eq.s32.totalorder %s27, 0
      %p61 = por %p59, %p60
      %s62 = ssub.s32 %s28, %s40
      %p63 = scmp.eq.s32.totalorder %s62, 0
      %s65 = sadd.s32 %s64, 1
      %s66 = scalar_select %p63, %s64, %s65
      %p69 = pneg %p63
      %p70 = scmp.eq.s32.totalorder %s21, 5
      %p71 = por %p69, %p70
      %p72 = scmp.ne.s32.totalorder %s64, %s67
      %p73 = scmp.eq.s32.totalorder %s21, 0
      %p74 = por %p72, %p73
      %p75 = scmp.ne.s32.totalorder %s64, %s67
      %p76 = scmp.eq.s32.totalorder %s26, 5
      %p77 = por %p75, %p76
      %p78 = scmp.ne.s32.totalorder %s67, %s68
      %p79 = scmp.eq.s32.totalorder %s26, 0
      %p80 = por %p78, %p79
      %p81 = scmp.ne.s32.totalorder %s67, %s68
      %p82 = scmp.eq.s32.totalorder %s27, 5
      %p83 = por %p81, %p82
      %p85 = scmp.ne.s32.totalorder %s68, %s84
      %p86 = scmp.eq.s32.totalorder %s27, 0
      %p87 = por %p85, %p86
      %s88 = ssub.s32 %s28, %s40
      %p89 = scmp.eq.s32.totalorder %s88, 0
      %s91 = sadd.s32 %s90, 1
      %s92 = scalar_select %p89, %s90, %s91
      %p95 = pneg %p89
      %p96 = scmp.eq.s32.totalorder %s21, 5
      %p97 = por %p95, %p96
      %p98 = scmp.ne.s32.totalorder %s90, %s93
      %p99 = scmp.eq.s32.totalorder %s21, 0
      %p100 = por %p98, %p99
      %p101 = scmp.ne.s32.totalorder %s90, %s93
      %p102 = scmp.eq.s32.totalorder %s26, 5
      %p103 = por %p101, %p102
      %p104 = scmp.ne.s32.totalorder %s93, %s94
      %p105 = scmp.eq.s32.totalorder %s26, 0
      %p106 = por %p104, %p105
      %p107 = scmp.ne.s32.totalorder %s93, %s94
      %p108 = scmp.eq.s32.totalorder %s27, 5
      %p109 = por %p107, %p108
      %p111 = scmp.ne.s32.totalorder %s94, %s110
      %p112 = scmp.eq.s32.totalorder %s27, 0
      %p113 = por %p111, %p112
      %s114 = ssub.s32 %s29, %s36
      %s115 = ssub.s32 %s28, %s40
      %s116 = sor.u32 %s114, %s115
      %p117 = scmp.eq.s32.totalorder %s116, 0
      %s119 = sadd.s32 %s118, 1
      %s120 = scalar_select %p117, %s118, %s119
      %p123 = pneg %p117
      %p124 = scmp.eq.s32.totalorder %s21, 5
      %p125 = por %p123, %p124
      %p126 = scmp.ne.s32.totalorder %s118, %s121
      %p127 = scmp.eq.s32.totalorder %s21, 0
      %p128 = por %p126, %p127
      %p129 = scmp.ne.s32.totalorder %s118, %s121
      %p130 = scmp.eq.s32.totalorder %s26, 5
      %p131 = por %p129, %p130
      %p132 = scmp.ne.s32.totalorder %s121, %s122
      %p133 = scmp.eq.s32.totalorder %s26, 0
      %p134 = por %p132, %p133
      %p135 = scmp.ne.s32.totalorder %s121, %s122
      %p136 = scmp.eq.s32.totalorder %s27, 5
      %p137 = por %p135, %p136
      %p139 = scmp.ne.s32.totalorder %s122, %s138
      %p140 = scmp.eq.s32.totalorder %s27, 0
      %p141 = por %p139, %p140
      %s142 = ssub.s32 %s29, %s36
      %s143 = ssub.s32 %s28, %s40
      %s144 = sor.u32 %s142, %s143
      %p145 = scmp.eq.s32.totalorder %s144, 0
      %s147 = sadd.s32 %s146, 1
      %s148 = scalar_select %p145, %s146, %s147
      %p151 = pneg %p145
      %p152 = scmp.eq.s32.totalorder %s21, 5
      %p153 = por %p151, %p152
      %p154 = scmp.ne.s32.totalorder %s146, %s149
      %p155 = scmp.eq.s32.totalorder %s21, 0
      %p156 = por %p154, %p155
      %p157 = scmp.ne.s32.totalorder %s146, %s149
      %p158 = scmp.eq.s32.totalorder %s26, 5
      %p159 = por %p157, %p158
      %p160 = scmp.ne.s32.totalorder %s149, %s150
      %p161 = scmp.eq.s32.totalorder %s26, 0
      %p162 = por %p160, %p161
      %p163 = scmp.ne.s32.totalorder %s149, %s150
      %p164 = scmp.eq.s32.totalorder %s27, 5
      %p165 = por %p163, %p164
      %p167 = scmp.ne.s32.totalorder %s150, %s166
      %p168 = scmp.eq.s32.totalorder %s27, 0
      %p169 = por %p167, %p168
      %s170 = ssub.s32 %s28, %s40
      %s171 = ssub.s32 %s29, %s36
      %s172 = sor.u32 %s170, %s171
      %p173 = scmp.eq.s32.totalorder %s172, 0
      %s175 = sadd.s32 %s174, 1
      %s176 = scalar_select %p173, %s174, %s175
      %p179 = pneg %p173
      %p180 = scmp.eq.s32.totalorder %s21, 5
      %p181 = por %p179, %p180
      %p182 = scmp.ne.s32.totalorder %s174, %s177
      %p183 = scmp.eq.s32.totalorder %s21, 0
      %p184 = por %p182, %p183
      %p185 = scmp.ne.s32.totalorder %s174, %s177
      %p186 = scmp.eq.s32.totalorder %s26, 5
      %p187 = por %p185, %p186
      %p188 = scmp.ne.s32.totalorder %s177, %s178
      %p189 = scmp.eq.s32.totalorder %s26, 0
      %p190 = por %p188, %p189
      %p191 = scmp.ne.s32.totalorder %s177, %s178
      %p192 = scmp.eq.s32.totalorder %s27, 5
      %p193 = por %p191, %p192
      %p195 = scmp.ne.s32.totalorder %s178, %s194
      %p196 = scmp.eq.s32.totalorder %s27, 0
      %p197 = por %p195, %p196
      %p198 = scmp.le.s32.totalorder 1, %s21
      %p199 = scmp.lt.s32.totalorder %s21, 7
      %p200 = pnand %p198, %p199
      %p201 = pneg %p200
      // Predicated region
      $region9: #{tpu_custom_call.1} parent=5 // pred_check
        _
      $region10: #{tpu_custom_call.1} parent=5 // pred_check_branch
        %203 = sbr.rel (%p200) target = $region12
      $region11: #{tpu_custom_call.1} parent=5 // pred_region
        %s204 = ssub.s32 %s21, 1
        // Predicated region
        $region13: #{tpu_custom_call.1} parent=11 // pred_check
          %p205 = pneg %p54
        $region14: #{tpu_custom_call.1} parent=11 // pred_check_branch
          %207 = sbr.rel (%p205) target = $region16
        $region15: #{tpu_custom_call.1} parent=11 // pred_region
          %s209 = ssub.s32 16, 16
          %210 = vsyncadd [#allocation5], %s209
          %213 = dma.hbm_to_smem %s0, 16, [#allocation2], [#allocation5]
        $region16: #{tpu_custom_call.1} parent=11 // pred_fallthru
          _
        // Predicated region
        $region17: #{tpu_custom_call.1} parent=11 // pred_check
          %p214 = pneg %p80
        $region18: #{tpu_custom_call.1} parent=11 // pred_check_branch
          %216 = sbr.rel (%p214) target = $region20
        $region19: #{tpu_custom_call.1} parent=11 // pred_region
          %s218 = ssub.s32 192, 192
          %219 = vsyncadd [#allocation3], %s218
          %s220 = smul.addr %s30, 12
          %s221 = smul.addr %s220, 16
          %s222 = scalar_lea.hbm %s1, %s221
          %s224 = sshll.u32 [#allocation6], 4
          %s225 = int_to_ptr.vmem [resolvable:$true] %s224
          %227 = dma.hbm_to_vmem [thread:$0]  %s222, 192, %s225, [#allocation3]
        $region20: #{tpu_custom_call.1} parent=11 // pred_fallthru
          _
        // Predicated region
        $region21: #{tpu_custom_call.1} parent=11 // pred_check
          %p228 = pneg %p106
        $region22: #{tpu_custom_call.1} parent=11 // pred_check_branch
          %230 = sbr.rel (%p228) target = $region24
        $region23: #{tpu_custom_call.1} parent=11 // pred_region
          %s232 = ssub.s32 192, 192
          %233 = vsyncadd [#allocation8], %s232
          %s234 = smul.addr %s30, 12
          %s235 = smul.addr %s234, 16
          %s236 = scalar_lea.hbm %s2, %s235
          %s238 = sshll.u32 [#allocation7], 4
          %s239 = int_to_ptr.vmem [resolvable:$true] %s238
          %241 = dma.hbm_to_vmem [thread:$0]  %s236, 192, %s239, [#allocation8]
        $region24: #{tpu_custom_call.1} parent=11 // pred_fallthru
          _
      $region12: #{tpu_custom_call.1} parent=5 // pred_fallthru
        _
      %p242 = scmp.lt.s32.totalorder %s21, 6
      // Predicated region
      $region25: #{tpu_custom_call.1} parent=5 // pred_check
        %p243 = pneg %p242
      $region26: #{tpu_custom_call.1} parent=5 // pred_check_branch
        %245 = sbr.rel (%p243) target = $region28
      $region27: #{tpu_custom_call.1} parent=5 // pred_region
        _
      $region28: #{tpu_custom_call.1} parent=5 // pred_fallthru
        _
      %p246 = scmp.le.s32.totalorder 1, %s21
      %p247 = scmp.lt.s32.totalorder %s21, 7
      %p248 = pnand %p246, %p247
      %p249 = pneg %p248
      // Predicated region
      $region29: #{tpu_custom_call.1} parent=5 // pred_check
        _
      $region30: #{tpu_custom_call.1} parent=5 // pred_check_branch
        %251 = sbr.rel (%p248) target = $region32
      $region31: #{tpu_custom_call.1} parent=5 // pred_region
        %s252 = ssub.s32 %s21, 1
        // Predicated region
        $region33: #{tpu_custom_call.1} parent=31 // pred_check
          %p253 = pneg %p54
        $region34: #{tpu_custom_call.1} parent=31 // pred_check_branch
          %255 = sbr.rel (%p253) target = $region36
        $region35: #{tpu_custom_call.1} parent=31 // pred_region
          %256 = dma.done [#allocation5], 16
        $region36: #{tpu_custom_call.1} parent=31 // pred_fallthru
          _
        // Predicated region
        $region37: #{tpu_custom_call.1} parent=31 // pred_check
          %p257 = pneg %p80
        $region38: #{tpu_custom_call.1} parent=31 // pred_check_branch
          %259 = sbr.rel (%p257) target = $region40
        $region39: #{tpu_custom_call.1} parent=31 // pred_region
          %260 = dma.done [#allocation3], 192
        $region40: #{tpu_custom_call.1} parent=31 // pred_fallthru
          _
        // Predicated region
        $region41: #{tpu_custom_call.1} parent=31 // pred_check
          %p261 = pneg %p106
        $region42: #{tpu_custom_call.1} parent=31 // pred_check_branch
          %263 = sbr.rel (%p261) target = $region44
        $region43: #{tpu_custom_call.1} parent=31 // pred_region
          %264 = dma.done [#allocation8], 192
        $region44: #{tpu_custom_call.1} parent=31 // pred_fallthru
          _
        %265 = sfence
        %p266 = pneg %p54
        %p267 = pneg %p51
        %p268 = pneg %p80
        %p269 = pneg %p77
        %p270 = pneg %p106
        %p271 = pneg %p103
        %p272 = pneg %p134
        %p273 = pneg %p131
        %s274 = sand.u32 %s121, 1
        %s275 = scalar_lea.sflag [#allocation4], %s274
        %s276 = sand.u32 %s121, 1
        %s277 = smul.addr %s276, 12
        %s278 = scalar_lea.vmem [#allocation9], %s277
        %p279 = pneg %p162
        %p280 = pneg %p159
        %s281 = sand.u32 %s26, 1
        %s282 = scalar_lea.sflag [#allocation11], %s281
        %s283 = sand.u32 %s149, 1
        %s284 = smul.addr %s283, 12
        %s285 = scalar_lea.vmem [#allocation10], %s284
        %p286 = pneg %p190
        %p287 = pneg %p187
        %s288 = sand.u32 %s26, 1
        %s289 = scalar_lea.sflag [#allocation11], %s288
        %s290 = sand.u32 %s177, 1
        %s291 = smul.addr %s290, 8
        %s292 = scalar_lea.vmem [#allocation12], %s291
        %s293 = sld [smem:[#allocation2 + %s31]]
        %s294 = sadd.f32 %s293, 1e-08
        %v295 = vstv %s294
        %v296 = vrcp.pop %v295
        %s297 = vtos %v296
        %v298 = vld [vmem:[#allocation6] sm:$0xff]
        %v299 = vld [vmem:[#allocation6 + $0x8] sm:$0xf]
        %v300 = vld [vmem:[#allocation7] sm:$0xff]
        %v301 = vld [vmem:[#allocation7 + $0x8] sm:$0xf]
        %v302 = vstv %s297
        %v303 = vmul.f32 %v298, %v302
        %v304 = vmul.f32 %v299, %v302
        %v305 = vsub.f32 %v303, 0.0078125
        %v306 = vsub.f32 %v304, 0.0078125
        %v307 = vmul.f32 %v305, 1.007874
        %v308 = vmul.f32 %v306, 1.007874
        %v309 = vmax.f32 %v307, 1e-08
        %v310 = vmax.f32 %v308, 1e-08
        %v311 = vmin.f32 %v309, 1.0
        %v312 = vmin.f32 %v310, 1.0
        %v313 = vmul.f32 %v300, %v302
        %v314 = vmul.f32 %v301, %v302
        %v315 = vsub.f32 %v313, 0.0078125
        %v316 = vsub.f32 %v314, 0.0078125
        %v317 = vmul.f32 %v315, 1.007874
        %v318 = vmul.f32 %v316, 1.007874
        %v319 = vmax.f32 %v317, 1e-08
        %v320 = vmax.f32 %v318, 1e-08
        %v321 = vmin.f32 %v319, 1.0
        %v322 = vmin.f32 %v320, 1.0
        %v323 = vpow.f32 %v311, 0.45454547
        %v324 = vpow.f32 %v312, 0.45454547
        %v325 = vpow.f32 %v321, 0.45454547
        %v326 = vpow.f32 %v322, 0.45454547
        %327 = vst [vmem:[%s278] sm:$0xff] %v323
        %v328 = vlaneseq
        %vm329 = vcmp.ge.s32.totalorder %v328, 0
        %vm330 = vcmp.lt.s32.totalorder %v328, 512
        %vm331 = vmand %vm329, %vm330
        %332 = vst.msk [vmem:[%s278 + $0x8] sm:$0xf] %vm331, %v324
        %333 = vst [vmem:[%s285] sm:$0xff] %v325
        %334 = vst.msk [vmem:[%s285 + $0x8] sm:$0xf] %vm331, %v326
        %v335 = vsub.f32 %v323, %v325
        %v336 = vsub.f32 %v324, %v326
        %v337 = vand.u32 2147483647, %v335
        %v338 = vand.u32 2147483647, %v336
        %v341 = vlaneseq
        %v342 = vshrl.u32 %v341, 7
        %v343 = vsub.s32 0, %v342
        %v344 = vrot.slane %v337, %v343
        %v345 = vlaneseq
        %v346 = vshrl.u32 %v345, 7
        %v347 = vsub.s32 1, %v346
        %v348 = vrot.slane %v337, %v347
        %v349 = vlaneseq
        %v350 = vshrl.u32 %v349, 7
        %v351 = vsub.s32 2, %v350
        %v352 = vrot.slane %v337, %v351
        %v353 = vlaneseq
        %v354 = vshrl.u32 %v353, 7
        %v355 = vsub.s32 3, %v354
        %v356 = vrot.slane %v337, %v355
        %v357 = vlaneseq
        %v358 = vshrl.u32 %v357, 7
        %v359 = vsub.s32 4, %v358
        %v360 = vrot.slane %v337, %v359
        %v361 = vlaneseq
        %v362 = vshrl.u32 %v361, 7
        %v363 = vsub.s32 5, %v362
        %v364 = vrot.slane %v337, %v363
        %v365 = vlaneseq
        %v366 = vshrl.u32 %v365, 7
        %v367 = vsub.s32 6, %v366
        %v368 = vrot.slane %v337, %v367
        %v369 = vlaneseq
        %v370 = vshrl.u32 %v369, 7
        %v371 = vsub.s32 7, %v370
        %v372 = vrot.slane %v337, %v371
        %v373 = vlaneseq
        %v374 = vshrl.u32 %v373, 7
        %v375 = vsub.s32 0, %v374
        %v376 = vrot.slane %v338, %v375
        %v377 = vlaneseq
        %v378 = vshrl.u32 %v377, 7
        %v379 = vsub.s32 1, %v378
        %v380 = vrot.slane %v338, %v379
        %v381 = vlaneseq
        %v382 = vshrl.u32 %v381, 7
        %v383 = vsub.s32 2, %v382
        %v384 = vrot.slane %v338, %v383
        %v385 = vlaneseq
        %v386 = vshrl.u32 %v385, 7
        %v387 = vsub.s32 3, %v386
        %v388 = vrot.slane %v338, %v387
        %vm401 = vcmask 1040384
        %v402 = vsel %vm401, %v344, 0.0
        %v403 = vsel %vm401, %v348, 0.0
        %v404 = vadd.f32 %v402, %v403
        %v405 = vsel %vm401, %v352, 0.0
        %v406 = vadd.f32 %v404, %v405
        %v407 = vsel %vm401, %v356, 0.0
        %v408 = vadd.f32 %v406, %v407
        %v409 = vsel %vm401, %v360, 0.0
        %v410 = vadd.f32 %v408, %v409
        %v411 = vsel %vm401, %v364, 0.0
        %v412 = vadd.f32 %v410, %v411
        %v413 = vsel %vm401, %v368, 0.0
        %v414 = vadd.f32 %v412, %v413
        %v415 = vsel %vm401, %v372, 0.0
        %v416 = vadd.f32 %v414, %v415
        %v417 = vsel %vm401, %v376, 0.0
        %v418 = vadd.f32 %v416, %v417
        %v419 = vsel %vm401, %v380, 0.0
        %v420 = vadd.f32 %v418, %v419
        %v421 = vsel %vm401, %v384, 0.0
        %v422 = vadd.f32 %v420, %v421
        %v423 = vsel %vm401, %v388, 0.0
        %v424 = vadd.f32 %v422, %v423
        %425 = vadd.xlane.f32.xlu0 %v424
        %v426 = vpop.xlane.xlu0 %425
        %v427 = vrot.slane %v426, 4
        %v428 = vadd.f32 %v426, %v427
        %v429 = vrot.slane %v428, 2
        %v430 = vadd.f32 %v428, %v429
        %v431 = vrot.slane %v430, 1
        %v432 = vadd.f32 %v430, %v431
        %s433 = vtos %v432
        %v434 = vstv %s433
        %435 = vst [vmem:[%s292] sm:$0xff] %v434
        %s436 = sand.u32 %s121, 1
        %s437 = scalar_lea.sflag [#allocation4], %s436
        %s438 = sand.u32 %s121, 1
        %s439 = smul.addr %s438, 12
        %s440 = scalar_lea.vmem [#allocation9], %s439
        %s441 = sand.u32 %s26, 1
        %s442 = scalar_lea.sflag [#allocation11], %s441
        %s443 = sand.u32 %s149, 1
        %s444 = smul.addr %s443, 12
        %s445 = scalar_lea.vmem [#allocation10], %s444
        %s446 = sand.u32 %s26, 1
        %s447 = scalar_lea.sflag [#allocation11], %s446
        %s448 = sand.u32 %s177, 1
        %s449 = smul.addr %s448, 8
        %s450 = scalar_lea.vmem [#allocation12], %s449
        // Predicated region
        $region45: #{tpu_custom_call.1} parent=31 // pred_check
          %p451 = pneg %p131
        $region46: #{tpu_custom_call.1} parent=31 // pred_check_branch
          %453 = sbr.rel (%p451) target = $region48
        $region47: #{tpu_custom_call.1} parent=31 // pred_region
          %s455 = ssub.s32 192, 192
          %456 = vsyncadd %s437, %s455
          %s457 = smul.addr %s30, 12
          %s458 = smul.addr %s31, 12
          %s459 = sadd.s32 %s457, %s458
          %s460 = smul.addr %s459, 16
          %s461 = scalar_lea.hbm %s3, %s460
          %s463 = sshll.u32 %s440, 4
          %s464 = int_to_ptr.vmem [resolvable:$true] %s463
          %466 = dma.vmem_to_hbm [thread:$0]  %s464, 192, %s461, %s437
        $region48: #{tpu_custom_call.1} parent=31 // pred_fallthru
          _
        // Predicated region
        $region49: #{tpu_custom_call.1} parent=31 // pred_check
          %p467 = pneg %p159
        $region50: #{tpu_custom_call.1} parent=31 // pred_check_branch
          %469 = sbr.rel (%p467) target = $region52
        $region51: #{tpu_custom_call.1} parent=31 // pred_region
          %s471 = ssub.s32 192, 192
          %472 = vsyncadd %s442, %s471
          %s473 = smul.addr %s30, 12
          %s474 = smul.addr %s31, 12
          %s475 = sadd.s32 %s473, %s474
          %s476 = smul.addr %s475, 16
          %s477 = scalar_lea.hbm %s4, %s476
          %s479 = sshll.u32 %s445, 4
          %s480 = int_to_ptr.vmem [resolvable:$true] %s479
          %482 = dma.vmem_to_hbm [thread:$0]  %s480, 192, %s477, %s442
        $region52: #{tpu_custom_call.1} parent=31 // pred_fallthru
          _
        // Predicated region
        $region53: #{tpu_custom_call.1} parent=31 // pred_check
          %p483 = pneg %p187
        $region54: #{tpu_custom_call.1} parent=31 // pred_check_branch
          %485 = sbr.rel (%p483) target = $region56
        $region55: #{tpu_custom_call.1} parent=31 // pred_region
          %s487 = ssub.s32 128, 128
          %488 = vsyncadd %s447, %s487
          %s489 = smul.addr %s30, 6
          %s490 = sadd.s32 %s31, %s489
          %s491 = smul.addr %s490, 128
          %s492 = scalar_lea.hbm %s5, %s491
          %s494 = sshll.u32 %s450, 4
          %s495 = int_to_ptr.vmem [resolvable:$true] %s494
          %497 = dma.vmem_to_hbm [thread:$0]  %s495, 128, %s492, %s447
        $region56: #{tpu_custom_call.1} parent=31 // pred_fallthru
          _
      $region32: #{tpu_custom_call.1} parent=5 // pred_fallthru
        _
      %p498 = scmp.le.s32.totalorder 2, %s21
      // Predicated region
      $region57: #{tpu_custom_call.1} parent=5 // pred_check
        %p499 = pneg %p498
      $region58: #{tpu_custom_call.1} parent=5 // pred_check_branch
        %501 = sbr.rel (%p499) target = $region60
      $region59: #{tpu_custom_call.1} parent=5 // pred_region
        %s502 = ssub.s32 %s21, 2
        // Predicated region
        $region61: #{tpu_custom_call.1} parent=59 // pred_check
          %p503 = pneg %p137
        $region62: #{tpu_custom_call.1} parent=59 // pred_check_branch
          %505 = sbr.rel (%p503) target = $region64
        $region63: #{tpu_custom_call.1} parent=59 // pred_region
          %s506 = sand.u32 %s122, 1
          %s507 = scalar_lea.sflag [#allocation4], %s506
          %s508 = sand.u32 %s122, 1
          %s509 = smul.addr %s508, 12
          %s510 = scalar_lea.vmem [#allocation9], %s509
          %511 = dma.done %s507, 192
        $region64: #{tpu_custom_call.1} parent=59 // pred_fallthru
          _
        // Predicated region
        $region65: #{tpu_custom_call.1} parent=59 // pred_check
          %p512 = pneg %p165
        $region66: #{tpu_custom_call.1} parent=59 // pred_check_branch
          %514 = sbr.rel (%p512) target = $region68
        $region67: #{tpu_custom_call.1} parent=59 // pred_region
          %s515 = sand.u32 %s27, 1
          %s516 = scalar_lea.sflag [#allocation11], %s515
          %s517 = sand.u32 %s150, 1
          %s518 = smul.addr %s517, 12
          %s519 = scalar_lea.vmem [#allocation10], %s518
          %520 = dma.done %s516, 192
        $region68: #{tpu_custom_call.1} parent=59 // pred_fallthru
          _
        // Predicated region
        $region69: #{tpu_custom_call.1} parent=59 // pred_check
          %p521 = pneg %p193
        $region70: #{tpu_custom_call.1} parent=59 // pred_check_branch
          %523 = sbr.rel (%p521) target = $region72
        $region71: #{tpu_custom_call.1} parent=59 // pred_region
          %s524 = sand.u32 %s27, 1
          %s525 = scalar_lea.sflag [#allocation11], %s524
          %s526 = sand.u32 %s178, 1
          %s527 = smul.addr %s526, 8
          %s528 = scalar_lea.vmem [#allocation12], %s527
          %529 = dma.done %s525, 128
        $region72: #{tpu_custom_call.1} parent=59 // pred_fallthru
          _
      $region60: #{tpu_custom_call.1} parent=5 // pred_fallthru
        _
    $region6: #{tpu_custom_call.1} parent=1 // loop_footer
      %s25 = sadd.s32 1, %s21
    $region7: #{tpu_custom_call.1} parent=1 // loop_footer_branch
      %20 = sbr.rel target = $region3
    $region8: #{tpu_custom_call.1} parent=1 // loop_exit
      _
    %530 = vsyncpa [#allocation3], 1
    %s531 = scalar_lea.sflag [#allocation3], 1
    %532 = vsyncpa %s531, 1
    %533 = vsyncpa [#allocation8], 1
    %534 = vsyncpa [#allocation4], 1
    %s535 = scalar_lea.sflag [#allocation4], 1
    %536 = vsyncpa %s535, 1
    %537 = vsyncpa [#allocation11], 1
    %s538 = scalar_lea.sflag [#allocation11], 1
    %539 = vsyncpa %s538, 1
    %540 = vsyncpa [#allocation5], 1
    %s541 = scalar_lea.sflag [#allocation5], 1
    %542 = vsyncpa %s541, 1

</llo_original>
